<compile_context>
chip_gen: v7x
topology: tpu7x:2x2x1
jax: 0.10.0
libtpu: 0.0.40
codegen_flags: <defaults>
</compile_context>

<pallas_src>
import jax
import jax.numpy as jnp
from jax.experimental import pallas as pl
from jax.experimental.pallas import tpu as pltpu

H_DIM = 32
N_HIDDEN_LAYERS = 2
N_CLASSES = 3
TXT_DIM = 300
IMG_DIM = 49
OUT_PAD = 128            # lane-dense output width (classes live in [:3])

_MAX_TILE_B = 2048


def _round_up(x, m):
    return (x + m - 1) // m * m


def _cdiv(a, b):
    return (a + b - 1) // b


def _vmem_budgets():
    """(streaming/input budget bytes, scoped vmem_limit bytes) per TPU gen."""
    cap = None
    try:
        info = pltpu.get_tpu_info()
        cap = int(getattr(info, "vmem_capacity_bytes", 0)) or None
    except Exception:
        cap = None
    if cap is None:
        cap = 64 * 1024 * 1024              # conservative (v7x-sized) fallback
    if cap >= 96 * 1024 * 1024:             # v5e / v6e: 128 MiB physical VMEM
        return 56 * 1024 * 1024, 96 * 1024 * 1024
    else:                                   # v7x: 64 MiB physical VMEM
        return 22 * 1024 * 1024, 46 * 1024 * 1024


def _weight_vmem_bytes(C):
    """Padded, double-buffered VMEM footprint of the weight operands (f32)."""
    def padded(r, c):
        return _round_up(r, 8) * _round_up(c, 128) * 4
    w = (padded(TXT_DIM, H_DIM)
         + padded(C * IMG_DIM, H_DIM)
         + padded(1, H_DIM)
         + N_HIDDEN_LAYERS * (padded(H_DIM, H_DIM) + padded(1, H_DIM))
         + padded(H_DIM, OUT_PAD)
         + padded(1, OUT_PAD))
    return 2 * w


def _pick_tile_b(B, T, C, itemsize, input_budget):
    """Largest multiple-of-8 batch tile that fits the VMEM budget, with
    >=2 grid steps when B > 8 and minimal batch over-padding."""
    txt_row = T * _round_up(TXT_DIM, 128) * itemsize          # x_txt tile row
    img_row = _round_up(C * IMG_DIM, 128) * itemsize          # flattened x_img row
    out_row = OUT_PAD * 4                                     # f32 output row
    inter_row = (_round_up(TXT_DIM, 128)                      # f32 s_txt
                 + _round_up(C * IMG_DIM, 128)                # f32 image cast
                 + OUT_PAD) * 4                               # f32 out temp
    per_row = 2 * (txt_row + img_row + out_row) + inter_row   # x2 = double buffer

    budget = max(input_budget - _weight_vmem_bytes(C), per_row)
    tile = budget // max(per_row, 1)
    tile = max(8, min(_MAX_TILE_B, (tile // 8) * 8))
    tile = min(tile, _round_up(B, 8))

    # Guarantee >=2 grid steps when possible (megacore sharding on v7x,
    # input-prefetch overlap on all generations).
    if B > 8 and _cdiv(B, tile) < 2:
        tile = max(8, _round_up(_cdiv(B, 2), 8))

    # Even out tiles across the chosen number of steps -> minimal over-padding.
    n_steps = _cdiv(B, tile)
    tile = max(8, _round_up(_cdiv(B, n_steps), 8))
    return tile


def mlp_merger_kernel(x_txt_ref, x_img_ref,
                      wt_ref, wi_ref, bf_ref,
                      wh_ref, bh_ref,
                      wout_ref, bout_ref,
                      o_ref):
    # Text branch: plain sum over T (1/T is folded into the fused weight).
    s_txt = jnp.sum(x_txt_ref[...].astype(jnp.float32), axis=1)      # (tile_b, 300)
    # Image branch: flattened (tile_b, C*49); mean + projection is a single
    # matmul against the C-times tiled, 1/C-scaled fused weight.
    x_img = x_img_ref[...].astype(jnp.float32)                       # (tile_b, C*49)

    # Fused projections + merge layer:
    #   ReLU(mean_txt @ (W_txt @ W0[:h]) + mean_img @ (W_img @ W0[h:]) + b_fused)
    x = (jnp.dot(s_txt, wt_ref[...], preferred_element_type=jnp.float32)
         + jnp.dot(x_img, wi_ref[...], preferred_element_type=jnp.float32)
         + bf_ref[...])
    x = jnp.maximum(x, 0.0)

    # Hidden layers: Linear(h, h) + ReLU, statically unrolled.
    for l in range(N_HIDDEN_LAYERS):
        x = jnp.maximum(
            jnp.dot(x, wh_ref[l], preferred_element_type=jnp.float32) + bh_ref[l],
            0.0)

    # Output head: Linear(h, 3) padded to 128 lanes -> lane-dense store.
    out = jnp.dot(x, wout_ref[...], preferred_element_type=jnp.float32) + bout_ref[...]
    o_ref[...] = out.astype(o_ref.dtype)


def mlp_merger_forward(x_txt, x_img, params, *, tile_b=None):
    (w_txt, b_txt, w_img, b_img, w0, b0, wh, bh, w_out, b_out) = params
    B, T, _ = x_txt.shape
    _, C, _ = x_img.shape
    img_flat = C * IMG_DIM

    # ---- Wrapper-side algebraic fusion (weights are KB-sized, done once).
    # concat(xt@Wt+bt, xi@Wi+bi) @ W0 + b0
    #   == xt @ (Wt @ W0[:h]) + xi @ (Wi @ W0[h:]) + (bt@W0[:h] + bi@W0[h:] + b0)
    # with the 1/T, 1/C mean scales folded in; the image weight is tiled C
    # times so the kernel consumes the flattened (B, C*49) image tensor.
    w0f = w0.astype(jnp.float32)
    wt_fused = (w_txt.astype(jnp.float32) @ w0f[:H_DIM]) / jnp.float32(T)   # (300, h)
    wi_fused = (w_img.astype(jnp.float32) @ w0f[H_DIM:]) / jnp.float32(C)   # (49, h)
    wi_tiled = jnp.tile(wi_fused, (C, 1))                                   # (C*49, h)
    b_fused = (b_txt.astype(jnp.float32) @ w0f[:H_DIM]
               + b_img.astype(jnp.float32) @ w0f[H_DIM:]
               + b0.astype(jnp.float32))

    # Lane-dense output head: pad (h, 3) -> (h, 128), (1, 3) -> (1, 128).
    w_out_p = jnp.zeros((H_DIM, OUT_PAD), jnp.float32).at[:, :N_CLASSES].set(
        w_out.astype(jnp.float32))
    b_out_p = jnp.zeros((1, OUT_PAD), jnp.float32).at[:, :N_CLASSES].set(
        b_out.astype(jnp.float32))

    # Flatten the image features: (B, C, 49) -> (B, C*49) (row-major matches
    # the vertical tiling of wi_tiled).
    x_img_flat = x_img.reshape(B, img_flat)

    # ---- Generation-aware batch tiling, pad B to a multiple of the tile.
    input_budget, vmem_limit = _vmem_budgets()
    if tile_b is None:
        tile_b = _pick_tile_b(B, T, C, x_txt.dtype.itemsize, input_budget)
    B_pad = _round_up(B, tile_b)
    if B_pad != B:
        x_txt = jnp.pad(x_txt, ((0, B_pad - B), (0, 0), (0, 0)))
        x_img_flat = jnp.pad(x_img_flat, ((0, B_pad - B), (0, 0)))

    grid = (B_pad // tile_b,)

    in_specs = [
        # Streamed, double-buffered per batch tile.
        pl.BlockSpec((tile_b, T, TXT_DIM), lambda i: (i, 0, 0)),
        pl.BlockSpec((tile_b, img_flat), lambda i: (i, 0)),
        # Weights: constant index_map -> VMEM-resident across the grid
        # (their double-buffer bytes are charged in _pick_tile_b).
        pl.BlockSpec((TXT_DIM, H_DIM), lambda i: (0, 0)),
        pl.BlockSpec((img_flat, H_DIM), lambda i: (0, 0)),
        pl.BlockSpec((1, H_DIM), lambda i: (0, 0)),
        pl.BlockSpec((N_HIDDEN_LAYERS, H_DIM, H_DIM), lambda i: (0, 0, 0)),
        pl.BlockSpec((N_HIDDEN_LAYERS, 1, H_DIM), lambda i: (0, 0, 0)),
        pl.BlockSpec((H_DIM, OUT_PAD), lambda i: (0, 0)),
        pl.BlockSpec((1, OUT_PAD), lambda i: (0, 0)),
    ]
    out_specs = pl.BlockSpec((tile_b, OUT_PAD), lambda i: (i, 0))

    # Advisory cost estimate: this call is long and HBM-read bound.
    itemsize = x_txt.dtype.itemsize
    bytes_accessed = int(B_pad * T * TXT_DIM * itemsize
                         + B_pad * img_flat * itemsize
                         + B_pad * OUT_PAD * 4
                         + _weight_vmem_bytes(C) // 2)
    flops = int(B_pad * T * TXT_DIM                                   # text sum
                + 2 * B_pad * H_DIM * (TXT_DIM + img_flat
                                       + N_HIDDEN_LAYERS * H_DIM)
                + 2 * B_pad * H_DIM * OUT_PAD)
    cost = pl.CostEstimate(flops=flops, transcendentals=0,
                           bytes_accessed=bytes_accessed)

    out_padded = pl.pallas_call(
        mlp_merger_kernel,
        grid=grid,
        in_specs=in_specs,
        out_specs=out_specs,
        out_shape=jax.ShapeDtypeStruct((B_pad, OUT_PAD), jnp.float32),
        compiler_params=pltpu.CompilerParams(
            dimension_semantics=("parallel",),
            vmem_limit_bytes=vmem_limit),
        cost_estimate=cost,
    )(x_txt, x_img_flat, wt_fused, wi_tiled, b_fused, wh, bh, w_out_p, b_out_p)

    return out_padded[:B, :N_CLASSES]


def init_params(key):
    ks = jax.random.split(key, 10)

    def lin_w(k, fan_in, fan_out):
        return (jax.random.normal(k, (fan_in, fan_out), jnp.float32)
                / jnp.sqrt(jnp.float32(fan_in)))

    def lin_b(k, fan_out):
        return 0.01 * jax.random.normal(k, (1, fan_out), jnp.float32)

    w_txt = lin_w(ks[0], TXT_DIM, H_DIM)
    b_txt = lin_b(ks[1], H_DIM)
    w_img = lin_w(ks[2], IMG_DIM, H_DIM)
    b_img = lin_b(ks[3], H_DIM)
    w0 = lin_w(ks[4], 2 * H_DIM, H_DIM)
    b0 = lin_b(ks[5], H_DIM)
    wh = (jax.random.normal(ks[6], (N_HIDDEN_LAYERS, H_DIM, H_DIM), jnp.float32)
          / jnp.sqrt(jnp.float32(H_DIM)))
    bh = 0.01 * jax.random.normal(ks[7], (N_HIDDEN_LAYERS, 1, H_DIM), jnp.float32)
    w_out = lin_w(ks[8], H_DIM, N_CLASSES)
    b_out = lin_b(ks[9], N_CLASSES)
    return (w_txt, b_txt, w_img, b_img, w0, b0, wh, bh, w_out, b_out)


def reference_forward(x_txt, x_img, params):
    (w_txt, b_txt, w_img, b_img, w0, b0, wh, bh, w_out, b_out) = params
    xt = jnp.mean(x_txt, axis=1)
    xi = jnp.mean(x_img, axis=1)
    ht = xt @ w_txt + b_txt
    hi = xi @ w_img + b_img
    x = jnp.concatenate([ht, hi], axis=-1)
    x = jnp.maximum(x @ w0 + b0, 0.0)
    for l in range(N_HIDDEN_LAYERS):
        x = jnp.maximum(x @ wh[l] + bh[l], 0.0)
    return x @ w_out + b_out


if __name__ == "__main__":
    key = jax.random.PRNGKey(0)
    k_txt, k_img, k_par = jax.random.split(key, 3)

    B, T, C = 2, 8, 4
    x_txt = jax.random.normal(k_txt, (B, T, TXT_DIM), jnp.float32)
    x_img = jax.random.normal(k_img, (B, C, IMG_DIM), jnp.float32)
    params = init_params(k_par)

    out = mlp_merger_forward(x_txt, x_img, params)
    out = jax.block_until_ready(out)

    ref = jax.block_until_ready(reference_forward(x_txt, x_img, params))
    assert out.shape == (B, N_CLASSES)
    assert jnp.allclose(out, ref, rtol=1e-2, atol=1e-2), (out, ref)

    print("KERNEL_OK")
</pallas_src>

<mosaic_0001>
module attributes {stable_mosaic.version = 11 : i64} {
  func.func @mlp_merger_kernel(%arg0: i32, %arg1: memref<8x8x300xf32, #tpu.memory_space<vmem>>, %arg2: memref<8x196xf32, #tpu.memory_space<vmem>>, %arg3: memref<300x32xf32, #tpu.memory_space<vmem>>, %arg4: memref<196x32xf32, #tpu.memory_space<vmem>>, %arg5: memref<1x32xf32, #tpu.memory_space<vmem>>, %arg6: memref<2x32x32xf32, #tpu.memory_space<vmem>>, %arg7: memref<2x1x32xf32, #tpu.memory_space<vmem>>, %arg8: memref<32x128xf32, #tpu.memory_space<vmem>>, %arg9: memref<1x128xf32, #tpu.memory_space<vmem>>, %arg10: memref<8x128xf32, #tpu.memory_space<vmem>>) attributes {dimension_semantics = [#tpu.dimension_semantics<parallel>], iteration_bounds = array<i64: 1>, scalar_prefetch = 0 : i64, scratch_operands = 0 : i64, tpu.core_type = #tpu.core_type<tc>, window_params = [{transform_indices = @transform_0, window_bounds = array<i64: 8, 8, 300>}, {transform_indices = @transform_1, window_bounds = array<i64: 8, 196>}, {pipeline_mode = #tpu.pipeline_mode<synchronous>, transform_indices = @transform_2, window_bounds = array<i64: 300, 32>}, {pipeline_mode = #tpu.pipeline_mode<synchronous>, transform_indices = @transform_3, window_bounds = array<i64: 196, 32>}, {pipeline_mode = #tpu.pipeline_mode<synchronous>, transform_indices = @transform_4, window_bounds = array<i64: 1, 32>}, {pipeline_mode = #tpu.pipeline_mode<synchronous>, transform_indices = @transform_5, window_bounds = array<i64: 2, 32, 32>}, {pipeline_mode = #tpu.pipeline_mode<synchronous>, transform_indices = @transform_6, window_bounds = array<i64: 2, 1, 32>}, {pipeline_mode = #tpu.pipeline_mode<synchronous>, transform_indices = @transform_7, window_bounds = array<i64: 32, 128>}, {pipeline_mode = #tpu.pipeline_mode<synchronous>, transform_indices = @transform_8, window_bounds = array<i64: 1, 128>}, {transform_indices = @transform_9, window_bounds = array<i64: 8, 128>}]} {
    %c0 = arith.constant 0 : index
    %c0_0 = arith.constant 0 : index
    %c0_1 = arith.constant 0 : index
    %0 = vector.load %arg1[%c0, %c0_0, %c0_1] : memref<8x8x300xf32, #tpu.memory_space<vmem>>, vector<8x8x300xf32>
    %cst = arith.constant dense<0.000000e+00> : vector<8x300xf32>
    %1 = vector.multi_reduction <add>, %0, %cst [1] : vector<8x8x300xf32> to vector<8x300xf32>
    %c0_2 = arith.constant 0 : index
    %c0_3 = arith.constant 0 : index
    %2 = vector.load %arg2[%c0_2, %c0_3] : memref<8x196xf32, #tpu.memory_space<vmem>>, vector<8x196xf32>
    %c0_4 = arith.constant 0 : index
    %c0_5 = arith.constant 0 : index
    %3 = vector.load %arg3[%c0_4, %c0_5] : memref<300x32xf32, #tpu.memory_space<vmem>>, vector<300x32xf32>
    %cst_6 = arith.constant dense<0.000000e+00> : vector<8x32xf32>
    %4 = tpu.matmul %1, %3, %cst_6 {dimension_numbers = #tpu.dot_dimension_numbers<[1], [0], [0], [1], [0, 0, 1, 1], [], []>} : vector<8x300xf32>, vector<300x32xf32>, vector<8x32xf32> -> vector<8x32xf32>
    %c0_7 = arith.constant 0 : index
    %c0_8 = arith.constant 0 : index
    %5 = vector.load %arg4[%c0_7, %c0_8] : memref<196x32xf32, #tpu.memory_space<vmem>>, vector<196x32xf32>
    %cst_9 = arith.constant dense<0.000000e+00> : vector<8x32xf32>
    %6 = tpu.matmul %2, %5, %cst_9 {dimension_numbers = #tpu.dot_dimension_numbers<[1], [0], [0], [1], [0, 0, 1, 1], [], []>} : vector<8x196xf32>, vector<196x32xf32>, vector<8x32xf32> -> vector<8x32xf32>
    %7 = arith.addf %4, %6 : vector<8x32xf32>
    %c0_10 = arith.constant 0 : index
    %c0_11 = arith.constant 0 : index
    %8 = vector.load %arg5[%c0_10, %c0_11] : memref<1x32xf32, #tpu.memory_space<vmem>>, vector<1x32xf32>
    %9 = vector.broadcast %8 : vector<1x32xf32> to vector<8x32xf32>
    %10 = arith.addf %7, %9 : vector<8x32xf32>
    %cst_12 = arith.constant 0.000000e+00 : f32
    %11 = vector.broadcast %cst_12 : f32 to vector<8x32xf32>
    %12 = arith.maximumf %10, %11 : vector<8x32xf32>
    %c0_13 = arith.constant 0 : index
    %c0_14 = arith.constant 0 : index
    %c0_15 = arith.constant 0 : index
    %13 = vector.load %arg6[%c0_13, %c0_14, %c0_15] : memref<2x32x32xf32, #tpu.memory_space<vmem>>, vector<1x32x32xf32>
    %14 = vector.shape_cast %13 : vector<1x32x32xf32> to vector<32x32xf32>
    %cst_16 = arith.constant dense<0.000000e+00> : vector<8x32xf32>
    %15 = tpu.matmul %12, %14, %cst_16 {dimension_numbers = #tpu.dot_dimension_numbers<[1], [0], [0], [1], [0, 0, 1, 1], [], []>} : vector<8x32xf32>, vector<32x32xf32>, vector<8x32xf32> -> vector<8x32xf32>
    %c0_17 = arith.constant 0 : index
    %c0_18 = arith.constant 0 : index
    %c0_19 = arith.constant 0 : index
    %16 = vector.load %arg7[%c0_17, %c0_18, %c0_19] : memref<2x1x32xf32, #tpu.memory_space<vmem>>, vector<1x1x32xf32>
    %17 = vector.shape_cast %16 : vector<1x1x32xf32> to vector<1x32xf32>
    %18 = vector.broadcast %17 : vector<1x32xf32> to vector<8x32xf32>
    %19 = arith.addf %15, %18 : vector<8x32xf32>
    %cst_20 = arith.constant 0.000000e+00 : f32
    %20 = vector.broadcast %cst_20 : f32 to vector<8x32xf32>
    %21 = arith.maximumf %19, %20 : vector<8x32xf32>
    %c1 = arith.constant 1 : index
    %c0_21 = arith.constant 0 : index
    %c0_22 = arith.constant 0 : index
    %22 = vector.load %arg6[%c1, %c0_21, %c0_22] : memref<2x32x32xf32, #tpu.memory_space<vmem>>, vector<1x32x32xf32>
    %23 = vector.shape_cast %22 : vector<1x32x32xf32> to vector<32x32xf32>
    %cst_23 = arith.constant dense<0.000000e+00> : vector<8x32xf32>
    %24 = tpu.matmul %21, %23, %cst_23 {dimension_numbers = #tpu.dot_dimension_numbers<[1], [0], [0], [1], [0, 0, 1, 1], [], []>} : vector<8x32xf32>, vector<32x32xf32>, vector<8x32xf32> -> vector<8x32xf32>
    %c1_24 = arith.constant 1 : index
    %c0_25 = arith.constant 0 : index
    %c0_26 = arith.constant 0 : index
    %25 = vector.load %arg7[%c1_24, %c0_25, %c0_26] : memref<2x1x32xf32, #tpu.memory_space<vmem>>, vector<1x1x32xf32>
    %26 = vector.shape_cast %25 : vector<1x1x32xf32> to vector<1x32xf32>
    %27 = vector.broadcast %26 : vector<1x32xf32> to vector<8x32xf32>
    %28 = arith.addf %24, %27 : vector<8x32xf32>
    %cst_27 = arith.constant 0.000000e+00 : f32
    %29 = vector.broadcast %cst_27 : f32 to vector<8x32xf32>
    %30 = arith.maximumf %28, %29 : vector<8x32xf32>
    %c0_28 = arith.constant 0 : index
    %c0_29 = arith.constant 0 : index
    %31 = vector.load %arg8[%c0_28, %c0_29] : memref<32x128xf32, #tpu.memory_space<vmem>>, vector<32x128xf32>
    %cst_30 = arith.constant dense<0.000000e+00> : vector<8x128xf32>
    %32 = tpu.matmul %30, %31, %cst_30 {dimension_numbers = #tpu.dot_dimension_numbers<[1], [0], [0], [1], [0, 0, 1, 1], [], []>} : vector<8x32xf32>, vector<32x128xf32>, vector<8x128xf32> -> vector<8x128xf32>
    %c0_31 = arith.constant 0 : index
    %c0_32 = arith.constant 0 : index
    %33 = vector.load %arg9[%c0_31, %c0_32] : memref<1x128xf32, #tpu.memory_space<vmem>>, vector<1x128xf32>
    %34 = vector.broadcast %33 : vector<1x128xf32> to vector<8x128xf32>
    %35 = arith.addf %32, %34 : vector<8x128xf32>
    %c0_33 = arith.constant 0 : index
    %c0_34 = arith.constant 0 : index
    %36 = vector.load %arg10[%c0_33, %c0_34] : memref<8x128xf32, #tpu.memory_space<vmem>>, vector<8x128xf32>
    tpu.vector_store %arg10[%c0_33, %c0_34], %35 {strides = array<i32>} : memref<8x128xf32, #tpu.memory_space<vmem>>, vector<8x128xf32>,
    return
  }
  func.func @transform_0(%arg0: i32) -> (i32, i32, i32) {
    %c0_i32 = arith.constant 0 : i32
    %c0_i32_0 = arith.constant 0 : i32
    %c0_i32_1 = arith.constant 0 : i32
    return %arg0, %c0_i32, %c0_i32_0 : i32, i32, i32
  }
  func.func @transform_1(%arg0: i32) -> (i32, i32) {
    %c0_i32 = arith.constant 0 : i32
    %c0_i32_0 = arith.constant 0 : i32
    return %arg0, %c0_i32 : i32, i32
  }
  func.func @transform_2(%arg0: i32) -> (i32, i32) {
    %c0_i32 = arith.constant 0 : i32
    %c0_i32_0 = arith.constant 0 : i32
    %c0_i32_1 = arith.constant 0 : i32
    return %c0_i32, %c0_i32_0 : i32, i32
  }
  func.func @transform_3(%arg0: i32) -> (i32, i32) {
    %c0_i32 = arith.constant 0 : i32
    %c0_i32_0 = arith.constant 0 : i32
    %c0_i32_1 = arith.constant 0 : i32
    return %c0_i32, %c0_i32_0 : i32, i32
  }
  func.func @transform_4(%arg0: i32) -> (i32, i32) {
    %c0_i32 = arith.constant 0 : i32
    %c0_i32_0 = arith.constant 0 : i32
    %c0_i32_1 = arith.constant 0 : i32
    return %c0_i32, %c0_i32_0 : i32, i32
  }
  func.func @transform_5(%arg0: i32) -> (i32, i32, i32) {
    %c0_i32 = arith.constant 0 : i32
    %c0_i32_0 = arith.constant 0 : i32
    %c0_i32_1 = arith.constant 0 : i32
    %c0_i32_2 = arith.constant 0 : i32
    return %c0_i32, %c0_i32_0, %c0_i32_1 : i32, i32, i32
  }
  func.func @transform_6(%arg0: i32) -> (i32, i32, i32) {
    %c0_i32 = arith.constant 0 : i32
    %c0_i32_0 = arith.constant 0 : i32
    %c0_i32_1 = arith.constant 0 : i32
    %c0_i32_2 = arith.constant 0 : i32
    return %c0_i32, %c0_i32_0, %c0_i32_1 : i32, i32, i32
  }
  func.func @transform_7(%arg0: i32) -> (i32, i32) {
    %c0_i32 = arith.constant 0 : i32
    %c0_i32_0 = arith.constant 0 : i32
    %c0_i32_1 = arith.constant 0 : i32
    return %c0_i32, %c0_i32_0 : i32, i32
  }
  func.func @transform_8(%arg0: i32) -> (i32, i32) {
    %c0_i32 = arith.constant 0 : i32
    %c0_i32_0 = arith.constant 0 : i32
    %c0_i32_1 = arith.constant 0 : i32
    return %c0_i32, %c0_i32_0 : i32, i32
  }
  func.func @transform_9(%arg0: i32) -> (i32, i32) {
    %c0_i32 = arith.constant 0 : i32
    %c0_i32_0 = arith.constant 0 : i32
    return %arg0, %c0_i32 : i32, i32
  }
}

</mosaic_0001>

<llo_original>
// kernel: tpu_custom_call.1
$region0: #{tpu_custom_call.1}
  #allocation0 [shape = 'u32[]', space=smem, size = 0x4, offset = 0x4, fixed_abs, tag = 'smem constant byte address 0x4 - core index']
  #allocation1 [shape = 'u32[144,128]{1,0:T(1,128)}', space=vmem, size = 0x12000, scoped, tag = 'internal scratch']
  %s0 = inlined_call_operand.vmem [shape: f32[8,8,300], index: 0, kind: input, shape index: {}]
  %s1 = inlined_call_operand.vmem [shape: f32[8,196], index: 1, kind: input, shape index: {}]
  %s2 = inlined_call_operand.vmem [shape: f32[300,32], index: 2, kind: input, shape index: {}]
  %s3 = inlined_call_operand.vmem [shape: f32[196,32], index: 3, kind: input, shape index: {}]
  %s4 = inlined_call_operand.vmem [shape: f32[1,32], index: 4, kind: input, shape index: {}]
  %s5 = inlined_call_operand.vmem [shape: f32[2,32,32], index: 5, kind: input, shape index: {}]
  %s6 = inlined_call_operand.vmem [shape: f32[2,1,32], index: 6, kind: input, shape index: {}]
  %s7 = inlined_call_operand.vmem [shape: f32[32,128], index: 7, kind: input, shape index: {}]
  %s8 = inlined_call_operand.vmem [shape: f32[1,128], index: 8, kind: input, shape index: {}]
  %s9 = inlined_call_operand.hbm [shape: f32[8,128], index: 9, kind: output, shape index: {}]
  %s10 = sld [smem:[#allocation0]]
  $region46: #{tpu_custom_call.1} parent=0
    _
  %s12 = ssub.s32 1, %s10
  %s13 = scalar_select 0, %s12, %s10
  $region1: #{tpu_custom_call.1} parent=0
    #allocation2 [shape = 'u8[4096]{0}', space=vmem, size = 0x1000, scoped, tag = 'output window, operand 0, single buffered']
    #allocation3 [shape = 's32[1]{0}', space=sflag, size = 0x4, scoped, tag = 'scoped memory for tpu_custom_call.1']
    %14 = vsyncpa [#allocation3], 0
    // Predicated region
    $region2: #{tpu_custom_call.1} parent=1 // pred_check
      _
    $region3: #{tpu_custom_call.1} parent=1 // pred_check_branch
      %16 = sbr.rel (0) target = $region5
    $region4: #{tpu_custom_call.1} parent=1 // pred_region
      _
    $region5: #{tpu_custom_call.1} parent=1 // pred_fallthru
      _
    // Predicated region
    $region6: #{tpu_custom_call.1} parent=1 // pred_check
      _
    $region7: #{tpu_custom_call.1} parent=1 // pred_check_branch
      %18 = sbr.rel (0) target = $region9
    $region8: #{tpu_custom_call.1} parent=1 // pred_region
      _
    $region9: #{tpu_custom_call.1} parent=1 // pred_fallthru
      _
    // Predicated region
    $region10: #{tpu_custom_call.1} parent=1 // pred_check
      _
    $region11: #{tpu_custom_call.1} parent=1 // pred_check_branch
      %20 = sbr.rel (0) target = $region13
    $region12: #{tpu_custom_call.1} parent=1 // pred_region
      _
    $region13: #{tpu_custom_call.1} parent=1 // pred_fallthru
      _
    // Predicated region
    $region14: #{tpu_custom_call.1} parent=1 // pred_check
      _
    $region15: #{tpu_custom_call.1} parent=1 // pred_check_branch
      %22 = sbr.rel (0) target = $region17
    $region16: #{tpu_custom_call.1} parent=1 // pred_region
      _
    $region17: #{tpu_custom_call.1} parent=1 // pred_fallthru
      _
    // Predicated region
    $region18: #{tpu_custom_call.1} parent=1 // pred_check
      _
    $region19: #{tpu_custom_call.1} parent=1 // pred_check_branch
      %24 = sbr.rel (0) target = $region21
    $region20: #{tpu_custom_call.1} parent=1 // pred_region
      _
    $region21: #{tpu_custom_call.1} parent=1 // pred_fallthru
      _
    // Predicated region
    $region22: #{tpu_custom_call.1} parent=1 // pred_check
      _
    $region23: #{tpu_custom_call.1} parent=1 // pred_check_branch
      %26 = sbr.rel (0) target = $region25
    $region24: #{tpu_custom_call.1} parent=1 // pred_region
      _
    $region25: #{tpu_custom_call.1} parent=1 // pred_fallthru
      _
    // Predicated region
    $region26: #{tpu_custom_call.1} parent=1 // pred_check
      _
    $region27: #{tpu_custom_call.1} parent=1 // pred_check_branch
      %28 = sbr.rel (0) target = $region29
    $region28: #{tpu_custom_call.1} parent=1 // pred_region
      _
    $region29: #{tpu_custom_call.1} parent=1 // pred_fallthru
      _
    // Predicated region
    $region30: #{tpu_custom_call.1} parent=1 // pred_check
      _
    $region31: #{tpu_custom_call.1} parent=1 // pred_check_branch
      %30 = sbr.rel (0) target = $region33
    $region32: #{tpu_custom_call.1} parent=1 // pred_region
      _
    $region33: #{tpu_custom_call.1} parent=1 // pred_fallthru
      _
    // Predicated region
    $region34: #{tpu_custom_call.1} parent=1 // pred_check
      _
    $region35: #{tpu_custom_call.1} parent=1 // pred_check_branch
      %32 = sbr.rel (0) target = $region37
    $region36: #{tpu_custom_call.1} parent=1 // pred_region
      _
    $region37: #{tpu_custom_call.1} parent=1 // pred_fallthru
      _
    %v33 = vld [vmem:[%s0] sm:$0xff]
    %v34 = vld [vmem:[%s0 + $0x8] sm:$0xff]
    %v35 = vld [vmem:[%s0 + $0x10] sm:$0xff]
    %v36 = vld [vmem:[%s0 + $0x18] sm:$0xff]
    %v37 = vld [vmem:[%s0 + $0x20] sm:$0xff]
    %v38 = vld [vmem:[%s0 + $0x28] sm:$0xff]
    %v39 = vld [vmem:[%s0 + $0x30] sm:$0xff]
    %v40 = vld [vmem:[%s0 + $0x38] sm:$0xff]
    %v41 = vld [vmem:[%s0 + $0x40] sm:$0xff]
    %v42 = vld [vmem:[%s0 + $0x48] sm:$0xff]
    %v43 = vld [vmem:[%s0 + $0x50] sm:$0xff]
    %v44 = vld [vmem:[%s0 + $0x58] sm:$0xff]
    %v45 = vld [vmem:[%s0 + $0x60] sm:$0xff]
    %v46 = vld [vmem:[%s0 + $0x68] sm:$0xff]
    %v47 = vld [vmem:[%s0 + $0x70] sm:$0xff]
    %v48 = vld [vmem:[%s0 + $0x78] sm:$0xff]
    %v49 = vld [vmem:[%s0 + $0x80] sm:$0xff]
    %v50 = vld [vmem:[%s0 + $0x88] sm:$0xff]
    %v51 = vld [vmem:[%s0 + $0x90] sm:$0xff]
    %v52 = vld [vmem:[%s0 + $0x98] sm:$0xff]
    %v53 = vld [vmem:[%s0 + $0xa0] sm:$0xff]
    %v54 = vld [vmem:[%s0 + $0xa8] sm:$0xff]
    %v55 = vld [vmem:[%s0 + $0xb0] sm:$0xff]
    %v56 = vld [vmem:[%s0 + $0xb8] sm:$0xff]
    %v57 = vrot.slane %v33, 4
    %v58 = vadd.f32 %v33, %v57
    %v59 = vrot.slane %v58, 2
    %v60 = vadd.f32 %v58, %v59
    %v61 = vrot.slane %v60, 1
    %v62 = vadd.f32 %v60, %v61
    %v63 = vrot.slane %v34, 4
    %v64 = vadd.f32 %v34, %v63
    %v65 = vrot.slane %v64, 2
    %v66 = vadd.f32 %v64, %v65
    %v67 = vrot.slane %v66, 1
    %v68 = vadd.f32 %v66, %v67
    %vm69 = vcmask 359424
    %v70 = vsel %vm69, %v35, 0.0
    %v71 = vrot.slane %v70, 4
    %v72 = vadd.f32 %v70, %v71
    %v73 = vrot.slane %v72, 2
    %v74 = vadd.f32 %v72, %v73
    %v75 = vrot.slane %v74, 1
    %v76 = vadd.f32 %v74, %v75
    %v77 = vrot.slane %v36, 4
    %v78 = vadd.f32 %v36, %v77
    %v79 = vrot.slane %v78, 2
    %v80 = vadd.f32 %v78, %v79
    %v81 = vrot.slane %v80, 1
    %v82 = vadd.f32 %v80, %v81
    %v83 = vrot.slane %v37, 4
    %v84 = vadd.f32 %v37, %v83
    %v85 = vrot.slane %v84, 2
    %v86 = vadd.f32 %v84, %v85
    %v87 = vrot.slane %v86, 1
    %v88 = vadd.f32 %v86, %v87
    %v89 = vsel %vm69, %v38, 0.0
    %v90 = vrot.slane %v89, 4
    %v91 = vadd.f32 %v89, %v90
    %v92 = vrot.slane %v91, 2
    %v93 = vadd.f32 %v91, %v92
    %v94 = vrot.slane %v93, 1
    %v95 = vadd.f32 %v93, %v94
    %v96 = vrot.slane %v39, 4
    %v97 = vadd.f32 %v39, %v96
    %v98 = vrot.slane %v97, 2
    %v99 = vadd.f32 %v97, %v98
    %v100 = vrot.slane %v99, 1
    %v101 = vadd.f32 %v99, %v100
    %v102 = vrot.slane %v40, 4
    %v103 = vadd.f32 %v40, %v102
    %v104 = vrot.slane %v103, 2
    %v105 = vadd.f32 %v103, %v104
    %v106 = vrot.slane %v105, 1
    %v107 = vadd.f32 %v105, %v106
    %v108 = vsel %vm69, %v41, 0.0
    %v109 = vrot.slane %v108, 4
    %v110 = vadd.f32 %v108, %v109
    %v111 = vrot.slane %v110, 2
    %v112 = vadd.f32 %v110, %v111
    %v113 = vrot.slane %v112, 1
    %v114 = vadd.f32 %v112, %v113
    %v115 = vrot.slane %v42, 4
    %v116 = vadd.f32 %v42, %v115
    %v117 = vrot.slane %v116, 2
    %v118 = vadd.f32 %v116, %v117
    %v119 = vrot.slane %v118, 1
    %v120 = vadd.f32 %v118, %v119
    %v121 = vrot.slane %v43, 4
    %v122 = vadd.f32 %v43, %v121
    %v123 = vrot.slane %v122, 2
    %v124 = vadd.f32 %v122, %v123
    %v125 = vrot.slane %v124, 1
    %v126 = vadd.f32 %v124, %v125
    %v127 = vsel %vm69, %v44, 0.0
    %v128 = vrot.slane %v127, 4
    %v129 = vadd.f32 %v127, %v128
    %v130 = vrot.slane %v129, 2
    %v131 = vadd.f32 %v129, %v130
    %v132 = vrot.slane %v131, 1
    %v133 = vadd.f32 %v131, %v132
    %v134 = vrot.slane %v45, 4
    %v135 = vadd.f32 %v45, %v134
    %v136 = vrot.slane %v135, 2
    %v137 = vadd.f32 %v135, %v136
    %v138 = vrot.slane %v137, 1
    %v139 = vadd.f32 %v137, %v138
    %v140 = vrot.slane %v46, 4
    %v141 = vadd.f32 %v46, %v140
    %v142 = vrot.slane %v141, 2
    %v143 = vadd.f32 %v141, %v142
    %v144 = vrot.slane %v143, 1
    %v145 = vadd.f32 %v143, %v144
    %v146 = vsel %vm69, %v47, 0.0
    %v147 = vrot.slane %v146, 4
    %v148 = vadd.f32 %v146, %v147
    %v149 = vrot.slane %v148, 2
    %v150 = vadd.f32 %v148, %v149
    %v151 = vrot.slane %v150, 1
    %v152 = vadd.f32 %v150, %v151
    %v153 = vrot.slane %v48, 4
    %v154 = vadd.f32 %v48, %v153
    %v155 = vrot.slane %v154, 2
    %v156 = vadd.f32 %v154, %v155
    %v157 = vrot.slane %v156, 1
    %v158 = vadd.f32 %v156, %v157
    %v159 = vrot.slane %v49, 4
    %v160 = vadd.f32 %v49, %v159
    %v161 = vrot.slane %v160, 2
    %v162 = vadd.f32 %v160, %v161
    %v163 = vrot.slane %v162, 1
    %v164 = vadd.f32 %v162, %v163
    %v165 = vsel %vm69, %v50, 0.0
    %v166 = vrot.slane %v165, 4
    %v167 = vadd.f32 %v165, %v166
    %v168 = vrot.slane %v167, 2
    %v169 = vadd.f32 %v167, %v168
    %v170 = vrot.slane %v169, 1
    %v171 = vadd.f32 %v169, %v170
    %v172 = vrot.slane %v51, 4
    %v173 = vadd.f32 %v51, %v172
    %v174 = vrot.slane %v173, 2
    %v175 = vadd.f32 %v173, %v174
    %v176 = vrot.slane %v175, 1
    %v177 = vadd.f32 %v175, %v176
    %v178 = vrot.slane %v52, 4
    %v179 = vadd.f32 %v52, %v178
    %v180 = vrot.slane %v179, 2
    %v181 = vadd.f32 %v179, %v180
    %v182 = vrot.slane %v181, 1
    %v183 = vadd.f32 %v181, %v182
    %v184 = vsel %vm69, %v53, 0.0
    %v185 = vrot.slane %v184, 4
    %v186 = vadd.f32 %v184, %v185
    %v187 = vrot.slane %v186, 2
    %v188 = vadd.f32 %v186, %v187
    %v189 = vrot.slane %v188, 1
    %v190 = vadd.f32 %v188, %v189
    %v191 = vrot.slane %v54, 4
    %v192 = vadd.f32 %v54, %v191
    %v193 = vrot.slane %v192, 2
    %v194 = vadd.f32 %v192, %v193
    %v195 = vrot.slane %v194, 1
    %v196 = vadd.f32 %v194, %v195
    %v197 = vrot.slane %v55, 4
    %v198 = vadd.f32 %v55, %v197
    %v199 = vrot.slane %v198, 2
    %v200 = vadd.f32 %v198, %v199
    %v201 = vrot.slane %v200, 1
    %v202 = vadd.f32 %v200, %v201
    %v203 = vsel %vm69, %v56, 0.0
    %v204 = vrot.slane %v203, 4
    %v205 = vadd.f32 %v203, %v204
    %v206 = vrot.slane %v205, 2
    %v207 = vadd.f32 %v205, %v206
    %v208 = vrot.slane %v207, 1
    %v209 = vadd.f32 %v207, %v208
    %v210 = vld [vmem:[%s1] sm:$0xff]
    %v211 = vld [vmem:[%s1 + $0x8] sm:$0xff]
    %v212 = vld [vmem:[%s2] sm:$0xff]
    %v213 = vld [vmem:[%s2 + $0x8] sm:$0xff]
    %v214 = vld [vmem:[%s2 + $0x10] sm:$0xff]
    %v215 = vld [vmem:[%s2 + $0x18] sm:$0xff]
    %v216 = vld [vmem:[%s2 + $0x20] sm:$0xff]
    %v217 = vld [vmem:[%s2 + $0x28] sm:$0xff]
    %v218 = vld [vmem:[%s2 + $0x30] sm:$0xff]
    %v219 = vld [vmem:[%s2 + $0x38] sm:$0xff]
    %v220 = vld [vmem:[%s2 + $0x40] sm:$0xff]
    %v221 = vld [vmem:[%s2 + $0x48] sm:$0xff]
    %v222 = vld [vmem:[%s2 + $0x50] sm:$0xff]
    %v223 = vld [vmem:[%s2 + $0x58] sm:$0xff]
    %v224 = vld [vmem:[%s2 + $0x60] sm:$0xff]
    %v225 = vld [vmem:[%s2 + $0x68] sm:$0xff]
    %v226 = vld [vmem:[%s2 + $0x70] sm:$0xff]
    %v227 = vld [vmem:[%s2 + $0x78] sm:$0xff]
    %v228 = vld [vmem:[%s2 + $0x80] sm:$0xff]
    %v229 = vld [vmem:[%s2 + $0x88] sm:$0xff]
    %v230 = vld [vmem:[%s2 + $0x90] sm:$0xff]
    %v231 = vld [vmem:[%s2 + $0x98] sm:$0xff]
    %v232 = vld [vmem:[%s2 + $0xa0] sm:$0xff]
    %v233 = vld [vmem:[%s2 + $0xa8] sm:$0xff]
    %v234 = vld [vmem:[%s2 + $0xb0] sm:$0xff]
    %v235 = vld [vmem:[%s2 + $0xb8] sm:$0xff]
    %v236 = vld [vmem:[%s2 + $0xc0] sm:$0xff]
    %v237 = vld [vmem:[%s2 + $0xc8] sm:$0xff]
    %v238 = vld [vmem:[%s2 + $0xd0] sm:$0xff]
    %v239 = vld [vmem:[%s2 + $0xd8] sm:$0xff]
    %v240 = vld [vmem:[%s2 + $0xe0] sm:$0xff]
    %v241 = vld [vmem:[%s2 + $0xe8] sm:$0xff]
    %v242 = vld [vmem:[%s2 + $0xf0] sm:$0xff]
    %v243 = vld [vmem:[%s2 + $0xf8] sm:$0xff]
    %v244 = vld [vmem:[%s2 + $0x100] sm:$0xff]
    %v245 = vld [vmem:[%s2 + $0x108] sm:$0xff]
    %v246 = vld [vmem:[%s2 + $0x110] sm:$0xff]
    %v247 = vld [vmem:[%s2 + $0x118] sm:$0xff]
    %v248 = vld [vmem:[%s2 + $0x120] sm:$0xff]
    %v249 = vld [vmem:[%s2 + $0x128] sm:$0xf]
    %v250 = vld [vmem:[%s3] sm:$0xff]
    %v251 = vld [vmem:[%s3 + $0x8] sm:$0xff]
    %v252 = vld [vmem:[%s3 + $0x10] sm:$0xff]
    %v253 = vld [vmem:[%s3 + $0x18] sm:$0xff]
    %v254 = vld [vmem:[%s3 + $0x20] sm:$0xff]
    %v255 = vld [vmem:[%s3 + $0x28] sm:$0xff]
    %v256 = vld [vmem:[%s3 + $0x30] sm:$0xff]
    %v257 = vld [vmem:[%s3 + $0x38] sm:$0xff]
    %v258 = vld [vmem:[%s3 + $0x40] sm:$0xff]
    %v259 = vld [vmem:[%s3 + $0x48] sm:$0xff]
    %v260 = vld [vmem:[%s3 + $0x50] sm:$0xff]
    %v261 = vld [vmem:[%s3 + $0x58] sm:$0xff]
    %v262 = vld [vmem:[%s3 + $0x60] sm:$0xff]
    %v263 = vld [vmem:[%s3 + $0x68] sm:$0xff]
    %v264 = vld [vmem:[%s3 + $0x70] sm:$0xff]
    %v265 = vld [vmem:[%s3 + $0x78] sm:$0xff]
    %v266 = vld [vmem:[%s3 + $0x80] sm:$0xff]
    %v267 = vld [vmem:[%s3 + $0x88] sm:$0xff]
    %v268 = vld [vmem:[%s3 + $0x90] sm:$0xff]
    %v269 = vld [vmem:[%s3 + $0x98] sm:$0xff]
    %v270 = vld [vmem:[%s3 + $0xa0] sm:$0xff]
    %v271 = vld [vmem:[%s3 + $0xa8] sm:$0xff]
    %v272 = vld [vmem:[%s3 + $0xb0] sm:$0xff]
    %v273 = vld [vmem:[%s3 + $0xb8] sm:$0xff]
    %v274 = vld [vmem:[%s3 + $0xc0] sm:$0xf]
    %vm275 = vcmask 556032
    %v277 = vsel %vm275, %v211, 0
    %vm279 = vcmask 1043456
    %v281 = vsel %vm279, %v274, 0
    %283 = vmatprep.subr.mxu0 0.0
    %284 = vmatpush1.msra.mxu0 %v250
    %285 = vmatprep.subr.mxu0 0.0
    %286 = vmatpush1.msra.mxu0 %v251
    %287 = vmatprep.subr.mxu0 0.0
    %288 = vmatpush1.msra.mxu0 %v252
    %289 = vmatprep.subr.mxu0 0.0
    %290 = vmatpush1.msra.mxu0 %v253
    %291 = vmatprep.subr.mxu0 0.0
    %292 = vmatpush1.msra.mxu0 %v254
    %293 = vmatprep.subr.mxu0 0.0
    %294 = vmatpush1.msra.mxu0 %v255
    %295 = vmatprep.subr.mxu0 0.0
    %296 = vmatpush1.msra.mxu0 %v256
    %297 = vmatprep.subr.mxu0 0.0
    %298 = vmatpush1.msra.mxu0 %v257
    %299 = vmatprep.subr.mxu0 0.0
    %300 = vmatpush1.msra.mxu0 %v258
    %301 = vmatprep.subr.mxu0 0.0
    %302 = vmatpush1.msra.mxu0 %v259
    %303 = vmatprep.subr.mxu0 0.0
    %304 = vmatpush1.msra.mxu0 %v260
    %305 = vmatprep.subr.mxu0 0.0
    %306 = vmatpush1.msra.mxu0 %v261
    %307 = vmatprep.subr.mxu0 0.0
    %308 = vmatpush1.msra.mxu0 %v262
    %309 = vmatprep.subr.mxu0 0.0
    %310 = vmatpush1.msra.mxu0 %v263
    %311 = vmatprep.subr.mxu0 0.0
    %312 = vmatpush1.msra.mxu0 %v264
    %313 = vmatprep.subr.mxu0 0.0
    %314 = vmatpush1.msra.mxu0 %v265
    %315 = vmatprep.subr.mxu0 0.0
    %316 = vmatpush1.msra.mxu0 %v266
    %317 = vmatprep.subr.mxu0 0.0
    %318 = vmatpush1.msra.mxu0 %v267
    %319 = vmatprep.subr.mxu0 0.0
    %320 = vmatpush1.msra.mxu0 %v268
    %321 = vmatprep.subr.mxu0 0.0
    %322 = vmatpush1.msra.mxu0 %v269
    %323 = vmatprep.subr.mxu0 0.0
    %324 = vmatpush1.msra.mxu0 %v270
    %325 = vmatprep.subr.mxu0 0.0
    %326 = vmatpush1.msra.mxu0 %v271
    %327 = vmatprep.subr.mxu0 0.0
    %328 = vmatpush1.msra.mxu0 %v272
    %329 = vmatprep.subr.mxu0 0.0
    %330 = vmatpush1.msra.mxu0 %v273
    %331 = vmatprep.subr.mxu0 0.0
    %332 = vmatpush1.msra.mxu0 %v281
    %333 = vmatprep.subr.mxu0 0.0
    %334 = vmatpush1.msra.mxu0 0.0
    %335 = vmatprep.subr.mxu0 0.0
    %336 = vmatpush1.msra.mxu0 0.0
    %337 = vmatprep.subr.mxu0 0.0
    %338 = vmatpush1.msra.mxu0 0.0
    %339 = vmatprep.subr.mxu0 0.0
    %340 = vmatpush1.msra.mxu0 0.0
    %341 = vmatprep.subr.mxu0 0.0
    %342 = vmatpush1.msra.mxu0 0.0
    %343 = vmatprep.subr.mxu0 0.0
    %344 = vmatpush1.msra.mxu0 0.0
    %345 = vmatprep.subr.mxu0 0.0
    %346 = vmatpush1.msra.mxu0 0.0
    %347 = vmatprep.mubr.f32.mxu0 %v277
    %348 = vmatmul.mubr.f32.gmra.mrb[0].mxu0 %v210
    %v349 = vpop.f32.mrb[0].mxu0
    %v350 = vadd.f32 0.0, %v349
    %v351 = vpop.f32.mrb[0].mxu0
    %352 = vdwg.mxu0
    %vm377 = vcmask 1041409
    %v378 = vsel %vm377, %v82, %v62
    %vm379 = vcmask 1042434
    %v380 = vsel %vm379, %v101, %v378
    %vm381 = vcmask 1043459
    %v382 = vsel %vm381, %v120, %v380
    %vm383 = vcmask 1044484
    %v384 = vsel %vm383, %v139, %v382
    %vm385 = vcmask 1045509
    %v386 = vsel %vm385, %v158, %v384
    %vm387 = vcmask 1046534
    %v388 = vsel %vm387, %v177, %v386
    %vm389 = vcmask 1047559
    %v390 = vsel %vm389, %v196, %v388
    %v391 = vsel %vm377, %v88, %v68
    %v392 = vsel %vm379, %v107, %v391
    %v393 = vsel %vm381, %v126, %v392
    %v394 = vsel %vm383, %v145, %v393
    %v395 = vsel %vm385, %v164, %v394
    %v396 = vsel %vm387, %v183, %v395
    %v397 = vsel %vm389, %v202, %v396
    %v398 = vsel %vm377, %v95, %v76
    %v399 = vsel %vm379, %v114, %v398
    %v400 = vsel %vm381, %v133, %v399
    %v401 = vsel %vm383, %v152, %v400
    %v402 = vsel %vm385, %v171, %v401
    %v403 = vsel %vm387, %v190, %v402
    %v404 = vsel %vm389, %v209, %v403
    %v407 = vsel %vm69, %v404, 0
    %v410 = vsel %vm279, %v249, 0
    %412 = vmatprep.subr.mxu0 0.0
    %413 = vmatpush1.msra.mxu0 %v212
    %414 = vmatprep.subr.mxu0 0.0
    %415 = vmatpush1.msra.mxu0 %v213
    %416 = vmatprep.subr.mxu0 0.0
    %417 = vmatpush1.msra.mxu0 %v214
    %418 = vmatprep.subr.mxu0 0.0
    %419 = vmatpush1.msra.mxu0 %v215
    %420 = vmatprep.subr.mxu0 0.0
    %421 = vmatpush1.msra.mxu0 %v216
    %422 = vmatprep.subr.mxu0 0.0
    %423 = vmatpush1.msra.mxu0 %v217
    %424 = vmatprep.subr.mxu0 0.0
    %425 = vmatpush1.msra.mxu0 %v218
    %426 = vmatprep.subr.mxu0 0.0
    %427 = vmatpush1.msra.mxu0 %v219
    %428 = vmatprep.subr.mxu0 0.0
    %429 = vmatpush1.msra.mxu0 %v220
    %430 = vmatprep.subr.mxu0 0.0
    %431 = vmatpush1.msra.mxu0 %v221
    %432 = vmatprep.subr.mxu0 0.0
    %433 = vmatpush1.msra.mxu0 %v222
    %434 = vmatprep.subr.mxu0 0.0
    %435 = vmatpush1.msra.mxu0 %v223
    %436 = vmatprep.subr.mxu0 0.0
    %437 = vmatpush1.msra.mxu0 %v224
    %438 = vmatprep.subr.mxu0 0.0
    %439 = vmatpush1.msra.mxu0 %v225
    %440 = vmatprep.subr.mxu0 0.0
    %441 = vmatpush1.msra.mxu0 %v226
    %442 = vmatprep.subr.mxu0 0.0
    %443 = vmatpush1.msra.mxu0 %v227
    %444 = vmatprep.subr.mxu0 0.0
    %445 = vmatpush1.msra.mxu0 %v228
    %446 = vmatprep.subr.mxu0 0.0
    %447 = vmatpush1.msra.mxu0 %v229
    %448 = vmatprep.subr.mxu0 0.0
    %449 = vmatpush1.msra.mxu0 %v230
    %450 = vmatprep.subr.mxu0 0.0
    %451 = vmatpush1.msra.mxu0 %v231
    %452 = vmatprep.subr.mxu0 0.0
    %453 = vmatpush1.msra.mxu0 %v232
    %454 = vmatprep.subr.mxu0 0.0
    %455 = vmatpush1.msra.mxu0 %v233
    %456 = vmatprep.subr.mxu0 0.0
    %457 = vmatpush1.msra.mxu0 %v234
    %458 = vmatprep.subr.mxu0 0.0
    %459 = vmatpush1.msra.mxu0 %v235
    %460 = vmatprep.subr.mxu0 0.0
    %461 = vmatpush1.msra.mxu0 %v236
    %462 = vmatprep.subr.mxu0 0.0
    %463 = vmatpush1.msra.mxu0 %v237
    %464 = vmatprep.subr.mxu0 0.0
    %465 = vmatpush1.msra.mxu0 %v238
    %466 = vmatprep.subr.mxu0 0.0
    %467 = vmatpush1.msra.mxu0 %v239
    %468 = vmatprep.subr.mxu0 0.0
    %469 = vmatpush1.msra.mxu0 %v240
    %470 = vmatprep.subr.mxu0 0.0
    %471 = vmatpush1.msra.mxu0 %v241
    %472 = vmatprep.subr.mxu0 0.0
    %473 = vmatpush1.msra.mxu0 %v242
    %474 = vmatprep.subr.mxu0 0.0
    %475 = vmatpush1.msra.mxu0 %v243
    %476 = vmatprep.mubr.f32.mxu0 %v397
    %477 = vmatmul.mubr.f32.gmra.mrb[0].mxu0 %v390
    %v478 = vpop.f32.mrb[0].mxu0
    %v479 = vadd.f32 %v350, %v478
    %v480 = vpop.f32.mrb[0].mxu0
    %481 = vdwg.mxu0
    %482 = vmatprep.subr.mxu0 0.0
    %483 = vmatpush1.msra.mxu0 %v244
    %484 = vmatprep.subr.mxu0 0.0
    %485 = vmatpush1.msra.mxu0 %v245
    %486 = vmatprep.subr.mxu0 0.0
    %487 = vmatpush1.msra.mxu0 %v246
    %488 = vmatprep.subr.mxu0 0.0
    %489 = vmatpush1.msra.mxu0 %v247
    %490 = vmatprep.subr.mxu0 0.0
    %491 = vmatpush1.msra.mxu0 %v248
    %492 = vmatprep.subr.mxu0 0.0
    %493 = vmatpush1.msra.mxu0 %v410
    %494 = vmatprep.subr.mxu0 0.0
    %495 = vmatpush1.msra.mxu0 0.0
    %496 = vmatprep.subr.mxu0 0.0
    %497 = vmatpush1.msra.mxu0 0.0
    %498 = vmatprep.subr.mxu0 0.0
    %499 = vmatpush1.msra.mxu0 0.0
    %500 = vmatprep.subr.mxu0 0.0
    %501 = vmatpush1.msra.mxu0 0.0
    %502 = vmatprep.subr.mxu0 0.0
    %503 = vmatpush1.msra.mxu0 0.0
    %504 = vmatprep.subr.mxu0 0.0
    %505 = vmatpush1.msra.mxu0 0.0
    %506 = vmatprep.subr.mxu0 0.0
    %507 = vmatpush1.msra.mxu0 0.0
    %508 = vmatprep.subr.mxu0 0.0
    %509 = vmatpush1.msra.mxu0 0.0
    %510 = vmatprep.subr.mxu0 0.0
    %511 = vmatpush1.msra.mxu0 0.0
    %512 = vmatprep.subr.mxu0 0.0
    %513 = vmatpush1.msra.mxu0 0.0
    %514 = vmatprep.subr.mxu0 0.0
    %515 = vmatpush1.msra.mxu0 0.0
    %516 = vmatprep.subr.mxu0 0.0
    %517 = vmatpush1.msra.mxu0 0.0
    %518 = vmatprep.subr.mxu0 0.0
    %519 = vmatpush1.msra.mxu0 0.0
    %520 = vmatprep.subr.mxu0 0.0
    %521 = vmatpush1.msra.mxu0 0.0
    %522 = vmatprep.subr.mxu0 0.0
    %523 = vmatpush1.msra.mxu0 0.0
    %524 = vmatprep.subr.mxu0 0.0
    %525 = vmatpush1.msra.mxu0 0.0
    %526 = vmatprep.subr.mxu0 0.0
    %527 = vmatpush1.msra.mxu0 0.0
    %528 = vmatprep.subr.mxu0 0.0
    %529 = vmatpush1.msra.mxu0 0.0
    %530 = vmatprep.subr.mxu0 0.0
    %531 = vmatpush1.msra.mxu0 0.0
    %532 = vmatprep.subr.mxu0 0.0
    %533 = vmatpush1.msra.mxu0 0.0
    %534 = vmatprep.subr.mxu0 0.0
    %535 = vmatpush1.msra.mxu0 0.0
    %536 = vmatprep.subr.mxu0 0.0
    %537 = vmatpush1.msra.mxu0 0.0
    %538 = vmatprep.subr.mxu0 0.0
    %539 = vmatpush1.msra.mxu0 0.0
    %540 = vmatprep.subr.mxu0 0.0
    %541 = vmatpush1.msra.mxu0 0.0
    %542 = vmatprep.subr.mxu0 0.0
    %543 = vmatpush1.msra.mxu0 0.0
    %544 = vmatprep.subr.mxu0 0.0
    %545 = vmatpush1.msra.mxu0 0.0
    %546 = vmatprep.mubr.f32.mxu0 0.0
    %547 = vmatmul.mubr.f32.gmra.mrb[0].mxu0 %v407
    %v548 = vpop.f32.mrb[0].mxu0
    %v549 = vadd.f32 %v479, %v548
    %v550 = vpop.f32.mrb[0].mxu0
    %551 = vdwg.mxu0
    %v552 = vld [vmem:[%s4] sm:$0x1]
    %v554 = vlaneseq
    %v555 = vshrl.u32 %v554, 7
    %v556 = vsub.s32 0, %v555
    %v557 = vrot.slane %v552, %v556
    %v559 = vadd.f32 %v549, %v557
    %v560 = vmax.f32 %v559, 0.0
    %v561 = vld [vmem:[%s5] sm:$0xff]
    %v562 = vld [vmem:[%s5 + $0x8] sm:$0xff]
    %v563 = vld [vmem:[%s5 + $0x10] sm:$0xff]
    %v564 = vld [vmem:[%s5 + $0x18] sm:$0xff]
    %v565 = vld [vmem:[%s6] sm:$0x1]
    %v567 = vlaneseq
    %v568 = vshrl.u32 %v567, 7
    %v569 = vsub.s32 0, %v568
    %v570 = vrot.slane %v565, %v569
    %vm572 = vcmask 261120
    %v574 = vsel %vm572, %v560, 0
    %576 = vmatprep.subr.mxu0 0.0
    %577 = vmatpush1.msra.mxu0 %v561
    %578 = vmatprep.subr.mxu0 0.0
    %579 = vmatpush1.msra.mxu0 %v562
    %580 = vmatprep.subr.mxu0 0.0
    %581 = vmatpush1.msra.mxu0 %v563
    %582 = vmatprep.subr.mxu0 0.0
    %583 = vmatpush1.msra.mxu0 %v564
    %584 = vmatprep.subr.mxu0 0.0
    %585 = vmatpush1.msra.mxu0 0.0
    %586 = vmatprep.subr.mxu0 0.0
    %587 = vmatpush1.msra.mxu0 0.0
    %588 = vmatprep.subr.mxu0 0.0
    %589 = vmatpush1.msra.mxu0 0.0
    %590 = vmatprep.subr.mxu0 0.0
    %591 = vmatpush1.msra.mxu0 0.0
    %592 = vmatprep.subr.mxu0 0.0
    %593 = vmatpush1.msra.mxu0 0.0
    %594 = vmatprep.subr.mxu0 0.0
    %595 = vmatpush1.msra.mxu0 0.0
    %596 = vmatprep.subr.mxu0 0.0
    %597 = vmatpush1.msra.mxu0 0.0
    %598 = vmatprep.subr.mxu0 0.0
    %599 = vmatpush1.msra.mxu0 0.0
    %600 = vmatprep.subr.mxu0 0.0
    %601 = vmatpush1.msra.mxu0 0.0
    %602 = vmatprep.subr.mxu0 0.0
    %603 = vmatpush1.msra.mxu0 0.0
    %604 = vmatprep.subr.mxu0 0.0
    %605 = vmatpush1.msra.mxu0 0.0
    %606 = vmatprep.subr.mxu0 0.0
    %607 = vmatpush1.msra.mxu0 0.0
    %608 = vmatprep.subr.mxu0 0.0
    %609 = vmatpush1.msra.mxu0 0.0
    %610 = vmatprep.subr.mxu0 0.0
    %611 = vmatpush1.msra.mxu0 0.0
    %612 = vmatprep.subr.mxu0 0.0
    %613 = vmatpush1.msra.mxu0 0.0
    %614 = vmatprep.subr.mxu0 0.0
    %615 = vmatpush1.msra.mxu0 0.0
    %616 = vmatprep.subr.mxu0 0.0
    %617 = vmatpush1.msra.mxu0 0.0
    %618 = vmatprep.subr.mxu0 0.0
    %619 = vmatpush1.msra.mxu0 0.0
    %620 = vmatprep.subr.mxu0 0.0
    %621 = vmatpush1.msra.mxu0 0.0
    %622 = vmatprep.subr.mxu0 0.0
    %623 = vmatpush1.msra.mxu0 0.0
    %624 = vmatprep.subr.mxu0 0.0
    %625 = vmatpush1.msra.mxu0 0.0
    %626 = vmatprep.subr.mxu0 0.0
    %627 = vmatpush1.msra.mxu0 0.0
    %628 = vmatprep.subr.mxu0 0.0
    %629 = vmatpush1.msra.mxu0 0.0
    %630 = vmatprep.subr.mxu0 0.0
    %631 = vmatpush1.msra.mxu0 0.0
    %632 = vmatprep.subr.mxu0 0.0
    %633 = vmatpush1.msra.mxu0 0.0
    %634 = vmatprep.subr.mxu0 0.0
    %635 = vmatpush1.msra.mxu0 0.0
    %636 = vmatprep.subr.mxu0 0.0
    %637 = vmatpush1.msra.mxu0 0.0
    %638 = vmatprep.subr.mxu0 0.0
    %639 = vmatpush1.msra.mxu0 0.0
    %640 = vmatprep.mubr.f32.mxu0 0.0
    %641 = vmatmul.mubr.f32.gmra.mrb[0].mxu0 %v574
    %v642 = vpop.f32.mrb[0].mxu0
    %v643 = vadd.f32 %v570, %v642
    %v644 = vpop.f32.mrb[0].mxu0
    %645 = vdwg.mxu0
    %v646 = vmax.f32 %v643, 0.0
    %s647 = scalar_lea.vmem %s5, 32
    %v648 = vld [vmem:[%s647] sm:$0xff]
    %v649 = vld [vmem:[%s647 + $0x8] sm:$0xff]
    %v650 = vld [vmem:[%s647 + $0x10] sm:$0xff]
    %v651 = vld [vmem:[%s647 + $0x18] sm:$0xff]
    %s652 = scalar_lea.vmem %s6, 1
    %v653 = vld [vmem:[%s652] sm:$0x1]
    %v655 = vlaneseq
    %v656 = vshrl.u32 %v655, 7
    %v657 = vsub.s32 0, %v656
    %v658 = vrot.slane %v653, %v657
    %v661 = vsel %vm572, %v646, 0
    %663 = vmatprep.subr.mxu0 0.0
    %664 = vmatpush1.msra.mxu0 %v648
    %665 = vmatprep.subr.mxu0 0.0
    %666 = vmatpush1.msra.mxu0 %v649
    %667 = vmatprep.subr.mxu0 0.0
    %668 = vmatpush1.msra.mxu0 %v650
    %669 = vmatprep.subr.mxu0 0.0
    %670 = vmatpush1.msra.mxu0 %v651
    %671 = vmatprep.subr.mxu0 0.0
    %672 = vmatpush1.msra.mxu0 0.0
    %673 = vmatprep.subr.mxu0 0.0
    %674 = vmatpush1.msra.mxu0 0.0
    %675 = vmatprep.subr.mxu0 0.0
    %676 = vmatpush1.msra.mxu0 0.0
    %677 = vmatprep.subr.mxu0 0.0
    %678 = vmatpush1.msra.mxu0 0.0
    %679 = vmatprep.subr.mxu0 0.0
    %680 = vmatpush1.msra.mxu0 0.0
    %681 = vmatprep.subr.mxu0 0.0
    %682 = vmatpush1.msra.mxu0 0.0
    %683 = vmatprep.subr.mxu0 0.0
    %684 = vmatpush1.msra.mxu0 0.0
    %685 = vmatprep.subr.mxu0 0.0
    %686 = vmatpush1.msra.mxu0 0.0
    %687 = vmatprep.subr.mxu0 0.0
    %688 = vmatpush1.msra.mxu0 0.0
    %689 = vmatprep.subr.mxu0 0.0
    %690 = vmatpush1.msra.mxu0 0.0
    %691 = vmatprep.subr.mxu0 0.0
    %692 = vmatpush1.msra.mxu0 0.0
    %693 = vmatprep.subr.mxu0 0.0
    %694 = vmatpush1.msra.mxu0 0.0
    %695 = vmatprep.subr.mxu0 0.0
    %696 = vmatpush1.msra.mxu0 0.0
    %697 = vmatprep.subr.mxu0 0.0
    %698 = vmatpush1.msra.mxu0 0.0
    %699 = vmatprep.subr.mxu0 0.0
    %700 = vmatpush1.msra.mxu0 0.0
    %701 = vmatprep.subr.mxu0 0.0
    %702 = vmatpush1.msra.mxu0 0.0
    %703 = vmatprep.subr.mxu0 0.0
    %704 = vmatpush1.msra.mxu0 0.0
    %705 = vmatprep.subr.mxu0 0.0
    %706 = vmatpush1.msra.mxu0 0.0
    %707 = vmatprep.subr.mxu0 0.0
    %708 = vmatpush1.msra.mxu0 0.0
    %709 = vmatprep.subr.mxu0 0.0
    %710 = vmatpush1.msra.mxu0 0.0
    %711 = vmatprep.subr.mxu0 0.0
    %712 = vmatpush1.msra.mxu0 0.0
    %713 = vmatprep.subr.mxu0 0.0
    %714 = vmatpush1.msra.mxu0 0.0
    %715 = vmatprep.subr.mxu0 0.0
    %716 = vmatpush1.msra.mxu0 0.0
    %717 = vmatprep.subr.mxu0 0.0
    %718 = vmatpush1.msra.mxu0 0.0
    %719 = vmatprep.subr.mxu0 0.0
    %720 = vmatpush1.msra.mxu0 0.0
    %721 = vmatprep.subr.mxu0 0.0
    %722 = vmatpush1.msra.mxu0 0.0
    %723 = vmatprep.subr.mxu0 0.0
    %724 = vmatpush1.msra.mxu0 0.0
    %725 = vmatprep.subr.mxu0 0.0
    %726 = vmatpush1.msra.mxu0 0.0
    %727 = vmatprep.mubr.f32.mxu0 0.0
    %728 = vmatmul.mubr.f32.gmra.mrb[0].mxu0 %v661
    %v729 = vpop.f32.mrb[0].mxu0
    %v730 = vadd.f32 %v658, %v729
    %v731 = vpop.f32.mrb[0].mxu0
    %732 = vdwg.mxu0
    %v733 = vmax.f32 %v730, 0.0
    %v734 = vld [vmem:[%s7] sm:$0xff]
    %v735 = vld [vmem:[%s7 + $0x8] sm:$0xff]
    %v736 = vld [vmem:[%s7 + $0x10] sm:$0xff]
    %v737 = vld [vmem:[%s7 + $0x18] sm:$0xff]
    %v738 = vld [vmem:[%s8] sm:$0x1]
    %v740 = vlaneseq
    %v741 = vshrl.u32 %v740, 7
    %v742 = vsub.s32 0, %v741
    %v743 = vrot.slane %v738, %v742
    %v746 = vsel %vm572, %v733, 0
    %748 = vmatprep.subr.mxu0 0.0
    %749 = vmatpush1.msra.mxu0 %v734
    %750 = vmatprep.subr.mxu0 0.0
    %751 = vmatpush1.msra.mxu0 %v735
    %752 = vmatprep.subr.mxu0 0.0
    %753 = vmatpush1.msra.mxu0 %v736
    %754 = vmatprep.subr.mxu0 0.0
    %755 = vmatpush1.msra.mxu0 %v737
    %756 = vmatprep.subr.mxu0 0.0
    %757 = vmatpush1.msra.mxu0 0.0
    %758 = vmatprep.subr.mxu0 0.0
    %759 = vmatpush1.msra.mxu0 0.0
    %760 = vmatprep.subr.mxu0 0.0
    %761 = vmatpush1.msra.mxu0 0.0
    %762 = vmatprep.subr.mxu0 0.0
    %763 = vmatpush1.msra.mxu0 0.0
    %764 = vmatprep.subr.mxu0 0.0
    %765 = vmatpush1.msra.mxu0 0.0
    %766 = vmatprep.subr.mxu0 0.0
    %767 = vmatpush1.msra.mxu0 0.0
    %768 = vmatprep.subr.mxu0 0.0
    %769 = vmatpush1.msra.mxu0 0.0
    %770 = vmatprep.subr.mxu0 0.0
    %771 = vmatpush1.msra.mxu0 0.0
    %772 = vmatprep.subr.mxu0 0.0
    %773 = vmatpush1.msra.mxu0 0.0
    %774 = vmatprep.subr.mxu0 0.0
    %775 = vmatpush1.msra.mxu0 0.0
    %776 = vmatprep.subr.mxu0 0.0
    %777 = vmatpush1.msra.mxu0 0.0
    %778 = vmatprep.subr.mxu0 0.0
    %779 = vmatpush1.msra.mxu0 0.0
    %780 = vmatprep.subr.mxu0 0.0
    %781 = vmatpush1.msra.mxu0 0.0
    %782 = vmatprep.subr.mxu0 0.0
    %783 = vmatpush1.msra.mxu0 0.0
    %784 = vmatprep.subr.mxu0 0.0
    %785 = vmatpush1.msra.mxu0 0.0
    %786 = vmatprep.subr.mxu0 0.0
    %787 = vmatpush1.msra.mxu0 0.0
    %788 = vmatprep.subr.mxu0 0.0
    %789 = vmatpush1.msra.mxu0 0.0
    %790 = vmatprep.subr.mxu0 0.0
    %791 = vmatpush1.msra.mxu0 0.0
    %792 = vmatprep.subr.mxu0 0.0
    %793 = vmatpush1.msra.mxu0 0.0
    %794 = vmatprep.subr.mxu0 0.0
    %795 = vmatpush1.msra.mxu0 0.0
    %796 = vmatprep.subr.mxu0 0.0
    %797 = vmatpush1.msra.mxu0 0.0
    %798 = vmatprep.subr.mxu0 0.0
    %799 = vmatpush1.msra.mxu0 0.0
    %800 = vmatprep.subr.mxu0 0.0
    %801 = vmatpush1.msra.mxu0 0.0
    %802 = vmatprep.subr.mxu0 0.0
    %803 = vmatpush1.msra.mxu0 0.0
    %804 = vmatprep.subr.mxu0 0.0
    %805 = vmatpush1.msra.mxu0 0.0
    %806 = vmatprep.subr.mxu0 0.0
    %807 = vmatpush1.msra.mxu0 0.0
    %808 = vmatprep.subr.mxu0 0.0
    %809 = vmatpush1.msra.mxu0 0.0
    %810 = vmatprep.subr.mxu0 0.0
    %811 = vmatpush1.msra.mxu0 0.0
    %812 = vmatprep.mubr.f32.mxu0 0.0
    %813 = vmatmul.mubr.f32.gmra.mrb[0].mxu0 %v746
    %v814 = vpop.f32.mrb[0].mxu0
    %v815 = vadd.f32 %v743, %v814
    %v816 = vpop.f32.mrb[0].mxu0
    %817 = vdwg.mxu0
    %818 = vst [vmem:[#allocation2] sm:$0xff] %v815
    // Predicated region
    $region38: #{tpu_custom_call.1} parent=1 // pred_check
      _
    $region39: #{tpu_custom_call.1} parent=1 // pred_check_branch
      %820 = sbr.rel (0) target = $region41
    $region40: #{tpu_custom_call.1} parent=1 // pred_region
      %s822 = ssub.s32 128, 128
      %823 = vsyncadd [#allocation3], %s822
      %s825 = sshll.u32 [#allocation2], 4
      %s826 = int_to_ptr.vmem [resolvable:$true] %s825
      %828 = dma.vmem_to_hbm [thread:$0]  %s826, 128, %s9, [#allocation3]
    $region41: #{tpu_custom_call.1} parent=1 // pred_fallthru
      _
    // Predicated region
    $region42: #{tpu_custom_call.1} parent=1 // pred_check
      _
    $region43: #{tpu_custom_call.1} parent=1 // pred_check_branch
      %830 = sbr.rel (0) target = $region45
    $region44: #{tpu_custom_call.1} parent=1 // pred_region
      %831 = dma.done [#allocation3], 128
    $region45: #{tpu_custom_call.1} parent=1 // pred_fallthru
      _
    %832 = vsyncpa [#allocation3], 1

</llo_original>
